<compile_context>
chip_gen: v6e
topology: v6e:2x2x1
jax: 0.10.0
libtpu: 0.0.40
codegen_flags: <defaults>
</compile_context>

<pallas_src>
import jax
import jax.numpy as jnp
from jax.experimental import pallas as pl
from jax.experimental.pallas import tpu as pltpu


# ---------------------------------------------------------------------------
# Kernels
# ---------------------------------------------------------------------------

def _copy_kernel(x_ref, o_ref):
    # Input and output blocks have identical shapes; the shared BlockSpec
    # already restricts traffic to the [0, L_out) prefix (modulo lane-tile
    # rounding), so no in-kernel slicing is needed.
    o_ref[...] = x_ref[...]


def _prefix_copy_kernel(x_ref, o_ref):
    # Small-L_out path: input block lane width is min(L, 128); store only the
    # leading L_out columns.
    o_ref[...] = x_ref[:, : o_ref.shape[1]]


# ---------------------------------------------------------------------------
# Tiling helpers
# ---------------------------------------------------------------------------

_LANE = 128
_MAX_L_TILE = 4096                     # lane-axis elements per block (cap)
_MAX_R_TILE = 1024                     # flattened (N*C) rows per block (cap)
_BLOCK_BUDGET_BYTES = 8 * 1024 * 1024  # per block; 4x blocks in flight -> 32 MiB
_VMEM_LIMIT_BYTES = 48 * 1024 * 1024   # explicit scoped-VMEM limit (v5e default
                                       # is only 16 MiB; v7x physical is 64 MiB)


def _round_up(x: int, m: int) -> int:
    return ((x + m - 1) // m) * m


def _round_down(x: int, m: int) -> int:
    return (x // m) * m


def _sublane_multiple(dtype) -> int:
    # Packed sublane count: 8 for 32-bit, 16 for 16-bit, 32 for 8-bit dtypes.
    itemsize = jnp.dtype(dtype).itemsize
    return 8 * max(1, 4 // itemsize)


def _balanced_tile(extent: int, unit: int, max_tile: int) -> int:
    """Tile that is a multiple of `unit`, <= max_tile, never exceeds `extent`,
    and splits `extent` into roughly equal steps (avoids a near-empty tail
    block when several steps are needed)."""
    max_tile = max(unit, _round_down(max_tile, unit))
    if extent <= unit:
        return extent
    n_steps = pl.cdiv(extent, max_tile)
    tile = _round_up(pl.cdiv(extent, n_steps), unit)
    return min(tile, max_tile, _round_down(extent, unit))


# ---------------------------------------------------------------------------
# Wrapper
# ---------------------------------------------------------------------------

def chomp1d(x: jax.Array, chomp_size: int) -> jax.Array:
    """Pallas equivalent of Chomp1d.forward: x[:, :, :-chomp_size]."""
    # NOTE: PyTorch's x[:, :, :-0] would return an empty tensor; we require a
    # positive chomp (the only case exercised in the TCN module).
    assert chomp_size > 0, "chomp_size must be positive (matches x[:, :, :-c])"
    n, c, l = x.shape
    l_out = l - chomp_size
    assert l_out > 0, "chomp_size must be smaller than the sequence length"

    itemsize = jnp.dtype(x.dtype).itemsize
    sub = _sublane_multiple(x.dtype)
    rows = n * c

    # Flatten (N, C) -> rows: free/contiguous reshape, restores full packed
    # tiles when C is tiny and gives one big parallel axis for megacore.
    x2 = x.reshape(rows, l)

    cost = pl.CostEstimate(
        flops=0,
        transcendentals=0,
        bytes_accessed=2 * rows * l_out * itemsize,
    )

    if l_out >= _LANE:
        # ---- Fast path: lane-dense tiled copy over the [0, L_out) prefix ----
        l_tile = _balanced_tile(l_out, _LANE, _MAX_L_TILE)
        if rows < sub:
            r_tile = rows  # full dim (satisfies the "equal full dim" rule)
        else:
            rows_by_budget = max(
                sub, _round_down(_BLOCK_BUDGET_BYTES // (l_tile * itemsize), sub)
            )
            r_tile = _balanced_tile(rows, sub, min(_MAX_R_TILE, rows_by_budget))

        grid = (pl.cdiv(rows, r_tile), pl.cdiv(l_out, l_tile))
        block = (r_tile, l_tile)
        idx = lambda r, li: (r, li)  # same map for input & output

        out2 = pl.pallas_call(
            _copy_kernel,
            out_shape=jax.ShapeDtypeStruct((rows, l_out), x.dtype),
            grid_spec=pltpu.PrefetchScalarGridSpec(
                num_scalar_prefetch=0,
                grid=grid,
                in_specs=[pl.BlockSpec(block, idx)],
                out_specs=pl.BlockSpec(block, idx),
            ),
            compiler_params=pltpu.CompilerParams(
                dimension_semantics=("parallel", "parallel"),
                vmem_limit_bytes=_VMEM_LIMIT_BYTES,
            ),
            cost_estimate=cost,
        )(x2)
        return out2.reshape(n, c, l_out)

    # ---- Small-L_out path (< 128 lanes): row-tiled, bounded VMEM ----
    in_lane = l if l < _LANE else _LANE  # never read past the first 128 cols
    if rows < sub:
        r_tile = rows
    else:
        rows_by_budget = max(
            sub, _round_down(_BLOCK_BUDGET_BYTES // (in_lane * itemsize), sub)
        )
        r_tile = _balanced_tile(rows, sub, min(_MAX_R_TILE, rows_by_budget))

    out2 = pl.pallas_call(
        _prefix_copy_kernel,
        out_shape=jax.ShapeDtypeStruct((rows, l_out), x.dtype),
        grid_spec=pltpu.PrefetchScalarGridSpec(
            num_scalar_prefetch=0,
            grid=(pl.cdiv(rows, r_tile),),
            in_specs=[pl.BlockSpec((r_tile, in_lane), lambda r: (r, 0))],
            out_specs=pl.BlockSpec((r_tile, l_out), lambda r: (r, 0)),
        ),
        compiler_params=pltpu.CompilerParams(
            dimension_semantics=("parallel",),
            vmem_limit_bytes=_VMEM_LIMIT_BYTES,
        ),
        cost_estimate=cost,
    )(x2)
    return out2.reshape(n, c, l_out)


# ---------------------------------------------------------------------------
# Self-test
# ---------------------------------------------------------------------------

if __name__ == "__main__":
    key = jax.random.PRNGKey(0)
    k0, k1, k2, k3 = jax.random.split(key, 4)

    # 1) Small shape consistent with the module (small-L_out path).
    N, C, L = 2, 4, 16
    chomp = 3  # e.g. (kernel_size - 1) * dilation in a TCN block
    x = jax.random.normal(k0, (N, C, L), dtype=jnp.float32)
    out = jax.block_until_ready(chomp1d(x, chomp))
    ref = x[:, :, :-chomp]
    assert out.shape == (N, C, L - chomp) and out.dtype == x.dtype
    assert jnp.array_equal(out, ref), "Pallas Chomp1d mismatch (small-L_out path)"

    # 2) Lane-dense tiled path, exact tiling.
    x2 = jax.random.normal(k1, (2, 16, 512), dtype=jnp.float32)
    out2 = jax.block_until_ready(chomp1d(x2, 128))  # L_out = 384
    assert jnp.array_equal(out2, x2[:, :, :-128]), "mismatch (tiled path)"

    # 3) Ragged L_out (not a multiple of the lane tile) on the tiled path.
    x3 = jax.random.normal(k2, (2, 16, 300), dtype=jnp.float32)
    out3 = jax.block_until_ready(chomp1d(x3, 30))  # L_out = 270
    assert jnp.array_equal(out3, x3[:, :, :-30]), "mismatch (ragged tiled path)"

    # 4) bf16 with C below the packed-sublane count (flattened rows keep tiles
    #    lane/sublane-dense).
    x4 = jax.random.normal(k3, (2, 4, 384), dtype=jnp.bfloat16)
    out4 = jax.block_until_ready(chomp1d(x4, 32))  # L_out = 352
    assert jnp.array_equal(out4, x4[:, :, :-32]), "mismatch (bf16 small-C path)"

    print("KERNEL_OK")
</pallas_src>

<mosaic_0001>
module attributes {stable_mosaic.version = 11 : i64} {
  func.func @_prefix_copy_kernel(%arg0: i32, %arg1: memref<8x16xf32, #tpu.memory_space<vmem>>, %arg2: memref<8x13xf32, #tpu.memory_space<vmem>>) attributes {dimension_semantics = [#tpu.dimension_semantics<parallel>], iteration_bounds = array<i64: 1>, scalar_prefetch = 0 : i64, scratch_operands = 0 : i64, tpu.core_type = #tpu.core_type<tc>, window_params = [{transform_indices = @transform_0, window_bounds = array<i64: 8, 16>}, {transform_indices = @transform_1, window_bounds = array<i64: 8, 13>}]} {
    %c0 = arith.constant 0 : index
    %c0_0 = arith.constant 0 : index
    %0 = vector.load %arg1[%c0, %c0_0] : memref<8x16xf32, #tpu.memory_space<vmem>>, vector<8x13xf32>
    %c0_1 = arith.constant 0 : index
    %c0_2 = arith.constant 0 : index
    %1 = vector.load %arg2[%c0_1, %c0_2] : memref<8x13xf32, #tpu.memory_space<vmem>>, vector<8x13xf32>
    tpu.vector_store %arg2[%c0_1, %c0_2], %0 {strides = array<i32>} : memref<8x13xf32, #tpu.memory_space<vmem>>, vector<8x13xf32>,
    return
  }
  func.func @transform_0(%arg0: i32) -> (i32, i32) {
    %c0_i32 = arith.constant 0 : i32
    %c0_i32_0 = arith.constant 0 : i32
    return %arg0, %c0_i32 : i32, i32
  }
  func.func @transform_1(%arg0: i32) -> (i32, i32) {
    %c0_i32 = arith.constant 0 : i32
    %c0_i32_0 = arith.constant 0 : i32
    return %arg0, %c0_i32 : i32, i32
  }
}

</mosaic_0001>

<llo_original>
// kernel: tpu_custom_call.1
$region0: #{tpu_custom_call.1}
  #allocation0 [shape = 'u32[]', space=smem, size = 0x4, offset = 0x4, fixed_abs, tag = 'smem constant byte address 0x4 - core index']
  #allocation1 [shape = 'u32[144,128]{1,0:T(1,128)}', space=vmem, size = 0x12000, scoped, tag = 'internal scratch']
  %s0 = inlined_call_operand.hbm [shape: f32[8,16], index: 0, kind: input, shape index: {}]
  %s1 = inlined_call_operand.hbm [shape: f32[8,13], index: 1, kind: output, shape index: {}]
  %s2 = sld [smem:[#allocation0]]
  $region18: #{tpu_custom_call.1} parent=0
    _
  %s4 = ssub.s32 1, %s2
  %s5 = scalar_select 0, %s4, %s2
  $region1: #{tpu_custom_call.1} parent=0
    #allocation2 [shape = 'u8[4096]{0}', space=vmem, size = 0x1000, scoped, tag = 'input window, operand 0, single buffered']
    #allocation3 [shape = 's32[1]{0}', space=sflag, size = 0x4, scoped, tag = 'scoped memory for tpu_custom_call.1']
    #allocation4 [shape = 's32[1]{0}', space=sflag, size = 0x4, scoped, tag = 'scoped memory for tpu_custom_call.1']
    #allocation5 [shape = 'u8[4096]{0}', space=vmem, size = 0x1000, scoped, tag = 'output window, operand 0, single buffered']
    %6 = vsyncpa [#allocation3], 0
    %7 = vsyncpa [#allocation4], 0
    // Predicated region
    $region2: #{tpu_custom_call.1} parent=1 // pred_check
      _
    $region3: #{tpu_custom_call.1} parent=1 // pred_check_branch
      %9 = sbr.rel (0) target = $region5
    $region4: #{tpu_custom_call.1} parent=1 // pred_region
      %s11 = ssub.s32 128, 128
      %12 = vsyncadd [#allocation3], %s11
      %s14 = sshll.u32 [#allocation2], 4
      %s15 = int_to_ptr.vmem [resolvable:$true] %s14
      %17 = dma.hbm_to_vmem [thread:$0]  %s0, 128, %s15, [#allocation3]
    $region5: #{tpu_custom_call.1} parent=1 // pred_fallthru
      _
    // Predicated region
    $region6: #{tpu_custom_call.1} parent=1 // pred_check
      _
    $region7: #{tpu_custom_call.1} parent=1 // pred_check_branch
      %19 = sbr.rel (0) target = $region9
    $region8: #{tpu_custom_call.1} parent=1 // pred_region
      %20 = dma.done [#allocation3], 128
    $region9: #{tpu_custom_call.1} parent=1 // pred_fallthru
      _
    %v21 = vld [vmem:[#allocation2] sm:$0xff]
    %vm22 = vcmask 105472
    %23 = vst.msk [vmem:[#allocation5] sm:$0xff] %vm22, %v21
    // Predicated region
    $region10: #{tpu_custom_call.1} parent=1 // pred_check
      _
    $region11: #{tpu_custom_call.1} parent=1 // pred_check_branch
      %25 = sbr.rel (0) target = $region13
    $region12: #{tpu_custom_call.1} parent=1 // pred_region
      %s27 = ssub.s32 128, 128
      %28 = vsyncadd [#allocation4], %s27
      %s30 = sshll.u32 [#allocation5], 4
      %s31 = int_to_ptr.vmem [resolvable:$true] %s30
      %33 = dma.vmem_to_hbm [thread:$0]  %s31, 128, %s1, [#allocation4]
    $region13: #{tpu_custom_call.1} parent=1 // pred_fallthru
      _
    // Predicated region
    $region14: #{tpu_custom_call.1} parent=1 // pred_check
      _
    $region15: #{tpu_custom_call.1} parent=1 // pred_check_branch
      %35 = sbr.rel (0) target = $region17
    $region16: #{tpu_custom_call.1} parent=1 // pred_region
      %36 = dma.done [#allocation4], 128
    $region17: #{tpu_custom_call.1} parent=1 // pred_fallthru
      _
    %37 = vsyncpa [#allocation3], 1
    %38 = vsyncpa [#allocation4], 1

</llo_original>
